<compile_context>
chip_gen: v6e
topology: v6e:2x2x1
jax: 0.10.0
libtpu: 0.0.40
codegen_flags: <defaults>
</compile_context>

<pallas_src>
import functools

import jax
import jax.numpy as jnp
from jax import lax
from jax.experimental import pallas as pl
from jax.experimental.pallas import tpu as pltpu

EPS = 1e-5
_MIB = 1024 * 1024


def _vmem_capacity_bytes():
    """Physical VMEM per core; conservative fallback if the query fails."""
    try:
        cap = getattr(pltpu.get_tpu_info(), "vmem_capacity_bytes", None)
        if cap:
            return int(cap)
    except Exception:
        pass
    return 64 * _MIB  # v7x per-TensorCore VMEM (smallest current generation)


def _weights_bytes(C):
    # double-buffered bf16 W' + f32 rowsum + f32 b'
    return 2 * (2 * C * C + 4 * C + 4 * C)


# ---------------------------------------------------------------------------
# Path A: fused whole-sample kernel, Bt samples per grid step.
# ---------------------------------------------------------------------------
def _fused_kernel(x_ref, wp_ref, rowsum_ref, bfold_ref, o_ref, *, inv_n, bt):
    w = wp_ref[...]           # (C, C) bf16
    rs = rowsum_ref[...]      # (C, 1) f32 -- rowsum of the bf16 weights
    b0 = bfold_ref[...]       # (C, 1) f32
    for s in range(bt):       # static unroll over the samples in this block
        x = x_ref[s]                                   # (C, HW)
        xf = x.astype(jnp.float32)
        ssum = jnp.sum(xf)                             # single-pass stats
        ssq = jnp.sum(xf * xf)
        mean = ssum * inv_n
        var = jnp.maximum(ssq * inv_n - mean * mean, 0.0)   # biased (torch)
        inv = lax.rsqrt(var + EPS)
        # y = inv * (W' @ x) + (b' - inv*mean*rowsum(W'))
        y = jnp.dot(w, x.astype(jnp.bfloat16),
                    preferred_element_type=jnp.float32)     # (C, HW) f32
        bias = b0 - (inv * mean) * rs
        o_ref[s] = (inv * y + bias).astype(o_ref.dtype)


# ---------------------------------------------------------------------------
# Path B: HW-tiled two-pass path (large C*HW; keeps v7x's 64 MiB VMEM happy).
# ---------------------------------------------------------------------------
def _stats_kernel(x_ref, sum_ref, sumsq_ref):
    t = pl.program_id(1)

    @pl.when(t == 0)
    def _():
        sum_ref[...] = jnp.zeros_like(sum_ref)
        sumsq_ref[...] = jnp.zeros_like(sumsq_ref)

    xf = x_ref[0].astype(jnp.float32)                  # (C, THW)
    sum_ref[...] += jnp.sum(xf)
    sumsq_ref[...] += jnp.sum(xf * xf)


def _apply_kernel(x_ref, wp_ref, rowsum_ref, bfold_ref, mean_ref, inv_ref,
                  o_ref):
    n = pl.program_id(0)
    mean = mean_ref[n]                                 # scalar from SMEM
    inv = inv_ref[n]
    y = jnp.dot(wp_ref[...], x_ref[0].astype(jnp.bfloat16),
                preferred_element_type=jnp.float32)    # (C, THW) f32
    bias = bfold_ref[...] - (inv * mean) * rowsum_ref[...]
    o_ref[0] = (inv * y + bias).astype(o_ref.dtype)


def prenorm_forward(x_nchw, gamma, beta, w, b, *, hw_tile=None):
    """GroupNorm(1, C) followed by fn == Conv2d(C, C, kernel_size=1).

    x_nchw: (N, C, H, W).  Returns (N, C, H, W) in x_nchw.dtype.
    hw_tile: optional forced spatial tile (multiple of 128 dividing H*W) to
             exercise / force the HW-tiled two-pass path.
    """
    N, C, H, W = x_nchw.shape
    HW = H * W
    inv_n = 1.0 / float(C * HW)
    in_sz = x_nchw.dtype.itemsize
    out_dtype = x_nchw.dtype
    out_sz = jnp.dtype(out_dtype).itemsize

    x3 = x_nchw.reshape(N, C, HW)     # collapses trailing dims: free

    # Fold the GroupNorm affine through the 1x1 conv (host side, f32):
    #   W' = w * gamma[None, :]      (scale the input-channel columns)
    #   b' = w @ beta + b
    wf = w.astype(jnp.float32)
    w_fold = wf * gamma.astype(jnp.float32)[None, :]           # (C, C)
    w_bf16 = w_fold.astype(jnp.bfloat16)                       # MXU operand
    # rowsum of the *bf16-rounded* weights so the hoisted-mean term cancels
    # against exactly what the MXU multiplies.
    rowsum = jnp.sum(w_bf16.astype(jnp.float32), axis=1, keepdims=True)
    b_fold = (wf @ beta.astype(jnp.float32)
              + b.astype(jnp.float32)).reshape(C, 1)           # (C, 1) f32

    vmem_cap = _vmem_capacity_bytes()
    w_bytes = _weights_bytes(C)

    def per_step_bytes(bt):
        blk = bt * C * HW
        # double-buffered in+out blocks + f32 stats copy + f32 y + bf16 x.
        return 2 * blk * (in_sz + out_sz) + bt * C * HW * 10 + w_bytes

    use_tiled = (hw_tile is not None
                 or per_step_bytes(1) > int(0.70 * vmem_cap))

    thw = None
    if use_tiled:
        thw = hw_tile
        if thw is None:
            budget = int(0.60 * vmem_cap)
            t = 128
            while t <= HW:
                if HW % t == 0:
                    need = 2 * C * t * (in_sz + out_sz) + C * t * 10 + w_bytes
                    if need <= budget:
                        thw = t
                t += 128
        if thw is None or HW % thw != 0 or thw % 128 != 0:
            # TODO(synk): HW has no suitable 128-multiple divisor; fall back
            # to whole-sample blocks and let Mosaic manage the pressure.
            use_tiled = False

    if not use_tiled:
        # -------------------- Path A: fused whole-sample blocks ------------
        bt = 1
        budget = min(16 * _MIB, int(0.5 * vmem_cap))
        for cand in range(1, min(N, 8) + 1):           # unroll-capped
            if N % cand == 0 and per_step_bytes(cand) <= budget:
                bt = cand
        needed = per_step_bytes(bt)
        vmem_limit = int(min(max(needed + 2 * _MIB, 32 * _MIB),
                             int(0.90 * vmem_cap)))

        kernel = functools.partial(_fused_kernel, inv_n=inv_n, bt=bt)
        out = pl.pallas_call(
            kernel,
            out_shape=jax.ShapeDtypeStruct((N, C, HW), out_dtype),
            grid_spec=pltpu.PrefetchScalarGridSpec(
                num_scalar_prefetch=0,
                grid=(N // bt,),
                in_specs=[
                    pl.BlockSpec((bt, C, HW), lambda i: (i, 0, 0)),  # x
                    pl.BlockSpec((C, C), lambda i: (0, 0)),          # W' bf16
                    pl.BlockSpec((C, 1), lambda i: (0, 0)),          # rowsum
                    pl.BlockSpec((C, 1), lambda i: (0, 0)),          # b'
                ],
                out_specs=pl.BlockSpec((bt, C, HW), lambda i: (i, 0, 0)),
            ),
            compiler_params=pltpu.CompilerParams(
                dimension_semantics=("parallel",),
                vmem_limit_bytes=vmem_limit),
        )(x3, w_bf16, rowsum, b_fold)
        return out.reshape(N, C, H, W)

    # ------------------------ Path B: HW-tiled two-pass ---------------------
    n_tiles = HW // thw
    tile_bytes = 2 * C * thw * (in_sz + out_sz) + C * thw * 10 + w_bytes
    vmem_limit = int(min(max(tile_bytes + 2 * _MIB, 32 * _MIB),
                         int(0.90 * vmem_cap)))

    # Pass 1: per-sample sum / sum-of-squares accumulated over HW tiles.
    s3, sq3 = pl.pallas_call(
        _stats_kernel,
        out_shape=(jax.ShapeDtypeStruct((N, 1, 1), jnp.float32),
                   jax.ShapeDtypeStruct((N, 1, 1), jnp.float32)),
        grid_spec=pltpu.PrefetchScalarGridSpec(
            num_scalar_prefetch=0,
            grid=(N, n_tiles),
            in_specs=[pl.BlockSpec((1, C, thw), lambda n, t: (n, 0, t))],
            out_specs=[pl.BlockSpec((1, 1, 1), lambda n, t: (n, 0, 0)),
                       pl.BlockSpec((1, 1, 1), lambda n, t: (n, 0, 0))],
        ),
        compiler_params=pltpu.CompilerParams(
            dimension_semantics=("parallel", "arbitrary"),
            vmem_limit_bytes=vmem_limit),
    )(x3)

    # Tiny (N,)-sized epilogue (negligible HBM traffic).
    ssum = s3.reshape(N)
    ssq = sq3.reshape(N)
    mean = ssum * inv_n
    var = jnp.maximum(ssq * inv_n - mean * mean, 0.0)
    inv = lax.rsqrt(var + EPS)

    # Pass 2: per-tile normalize + 1x1 conv; both grid axes are independent,
    # so both TensorCores get work even when N == 1 (v7x).
    out = pl.pallas_call(
        _apply_kernel,
        out_shape=jax.ShapeDtypeStruct((N, C, HW), out_dtype),
        grid_spec=pltpu.PrefetchScalarGridSpec(
            num_scalar_prefetch=0,
            grid=(N, n_tiles),
            in_specs=[
                pl.BlockSpec((1, C, thw), lambda n, t: (n, 0, t)),   # x tile
                pl.BlockSpec((C, C), lambda n, t: (0, 0)),           # W' bf16
                pl.BlockSpec((C, 1), lambda n, t: (0, 0)),           # rowsum
                pl.BlockSpec((C, 1), lambda n, t: (0, 0)),           # b'
                pl.BlockSpec(memory_space=pltpu.MemorySpace.SMEM),   # mean
                pl.BlockSpec(memory_space=pltpu.MemorySpace.SMEM),   # inv
            ],
            out_specs=pl.BlockSpec((1, C, thw), lambda n, t: (n, 0, t)),
        ),
        compiler_params=pltpu.CompilerParams(
            dimension_semantics=("parallel", "parallel"),
            vmem_limit_bytes=vmem_limit),
    )(x3, w_bf16, rowsum, b_fold, mean, inv)
    return out.reshape(N, C, H, W)


def prenorm_reference(x_nchw, gamma, beta, w, b):
    """Pure-JAX f32 reference of GroupNorm(1, C) + 1x1 conv."""
    N, C, H, W = x_nchw.shape
    x = x_nchw.astype(jnp.float32)
    mean = jnp.mean(x, axis=(1, 2, 3), keepdims=True)
    var = jnp.mean((x - mean) ** 2, axis=(1, 2, 3), keepdims=True)
    xn = (x - mean) * lax.rsqrt(var + EPS)
    xn = xn * gamma.reshape(1, C, 1, 1) + beta.reshape(1, C, 1, 1)
    y = jnp.einsum("oc,nchw->nohw", w, xn) + b.reshape(1, C, 1, 1)
    return y


if __name__ == "__main__":
    key = jax.random.PRNGKey(0)
    N, C, H, W = 2, 4, 16, 16

    kx, kw, kb, kg, kbe = jax.random.split(key, 5)
    x = jax.random.normal(kx, (N, C, H, W), dtype=jnp.float32)

    # GroupNorm affine params (non-trivial so the folding is actually tested)
    gamma = 1.0 + 0.1 * jax.random.normal(kg, (C,), dtype=jnp.float32)
    beta = 0.1 * jax.random.normal(kbe, (C,), dtype=jnp.float32)

    # fn = Conv2d(C, C, kernel_size=1): deterministic synthetic init
    bound = 1.0 / (C ** 0.5)
    w = jax.random.uniform(kw, (C, C), dtype=jnp.float32,
                           minval=-bound, maxval=bound)
    b = jax.random.uniform(kb, (C,), dtype=jnp.float32,
                           minval=-bound, maxval=bound)

    ref = prenorm_reference(x, gamma, beta, w, b)

    # Default path: fused multi-sample blocks.
    out_a = jax.block_until_ready(prenorm_forward(x, gamma, beta, w, b))
    # Forced HW-tiled two-pass path (used automatically for large C*HW).
    out_b = jax.block_until_ready(
        prenorm_forward(x, gamma, beta, w, b, hw_tile=128))

    for out in (out_a, out_b):
        assert out.shape == (N, C, H, W)
        max_err = jnp.max(jnp.abs(out.astype(jnp.float32) - ref))
        # bf16 matmul operands (f32 accumulation/stats) -> relaxed tolerance.
        assert jnp.allclose(out.astype(jnp.float32), ref,
                            atol=5e-2, rtol=5e-2), f"max abs err {max_err}"

    print("KERNEL_OK")
</pallas_src>

<mosaic_0001>
module attributes {stable_mosaic.version = 11 : i64} {
  func.func @_fused_kernel(%arg0: i32, %arg1: memref<2x4x256xf32, #tpu.memory_space<vmem>>, %arg2: memref<4x4xbf16, #tpu.memory_space<vmem>>, %arg3: memref<4x1xf32, #tpu.memory_space<vmem>>, %arg4: memref<4x1xf32, #tpu.memory_space<vmem>>, %arg5: memref<2x4x256xf32, #tpu.memory_space<vmem>>) attributes {dimension_semantics = [#tpu.dimension_semantics<parallel>], iteration_bounds = array<i64: 1>, scalar_prefetch = 0 : i64, scratch_operands = 0 : i64, tpu.core_type = #tpu.core_type<tc>, window_params = [{transform_indices = @transform_0, window_bounds = array<i64: 2, 4, 256>}, {pipeline_mode = #tpu.pipeline_mode<synchronous>, transform_indices = @transform_1, window_bounds = array<i64: 4, 4>}, {pipeline_mode = #tpu.pipeline_mode<synchronous>, transform_indices = @transform_2, window_bounds = array<i64: 4, 1>}, {pipeline_mode = #tpu.pipeline_mode<synchronous>, transform_indices = @transform_3, window_bounds = array<i64: 4, 1>}, {transform_indices = @transform_4, window_bounds = array<i64: 2, 4, 256>}]} {
    %c0 = arith.constant 0 : index
    %c0_0 = arith.constant 0 : index
    %0 = vector.load %arg2[%c0, %c0_0] : memref<4x4xbf16, #tpu.memory_space<vmem>>, vector<4x4xbf16>
    %c0_1 = arith.constant 0 : index
    %c0_2 = arith.constant 0 : index
    %1 = vector.load %arg3[%c0_1, %c0_2] : memref<4x1xf32, #tpu.memory_space<vmem>>, vector<4x1xf32>
    %c0_3 = arith.constant 0 : index
    %c0_4 = arith.constant 0 : index
    %2 = vector.load %arg4[%c0_3, %c0_4] : memref<4x1xf32, #tpu.memory_space<vmem>>, vector<4x1xf32>
    %c0_5 = arith.constant 0 : index
    %c0_6 = arith.constant 0 : index
    %c0_7 = arith.constant 0 : index
    %3 = vector.load %arg1[%c0_5, %c0_6, %c0_7] : memref<2x4x256xf32, #tpu.memory_space<vmem>>, vector<1x4x256xf32>
    %4 = vector.shape_cast %3 : vector<1x4x256xf32> to vector<4x256xf32>
    %5 = vector.shape_cast %4 : vector<4x256xf32> to vector<1x4x256xf32>
    %cst = arith.constant dense<0.000000e+00> : vector<1xf32>
    %6 = vector.multi_reduction <add>, %5, %cst [1, 2] : vector<1x4x256xf32> to vector<1xf32>
    %7 = vector.shape_cast %6 : vector<1xf32> to vector<1x1x1xf32>
    %8 = vector.extract %7[0, 0, 0] : f32 from vector<1x1x1xf32>
    %9 = arith.mulf %4, %4 : vector<4x256xf32>
    %10 = vector.shape_cast %9 : vector<4x256xf32> to vector<1x4x256xf32>
    %cst_8 = arith.constant dense<0.000000e+00> : vector<1xf32>
    %11 = vector.multi_reduction <add>, %10, %cst_8 [1, 2] : vector<1x4x256xf32> to vector<1xf32>
    %12 = vector.shape_cast %11 : vector<1xf32> to vector<1x1x1xf32>
    %13 = vector.extract %12[0, 0, 0] : f32 from vector<1x1x1xf32>
    %cst_9 = arith.constant 9.765625E-4 : f32
    %14 = arith.mulf %8, %cst_9 : f32
    %cst_10 = arith.constant 9.765625E-4 : f32
    %15 = arith.mulf %13, %cst_10 : f32
    %16 = arith.mulf %14, %14 : f32
    %17 = arith.subf %15, %16 : f32
    %cst_11 = arith.constant 0.000000e+00 : f32
    %18 = arith.maximumf %17, %cst_11 : f32
    %cst_12 = arith.constant 9.99999974E-6 : f32
    %19 = arith.addf %18, %cst_12 : f32
    %20 = math.rsqrt %19 : f32
    %21 = arith.truncf %4 : vector<4x256xf32> to vector<4x256xbf16>
    %cst_13 = arith.constant dense<0.000000e+00> : vector<4x256xf32>
    %22 = tpu.matmul %0, %21, %cst_13 {dimension_numbers = #tpu.dot_dimension_numbers<[1], [0], [0], [1], [0, 0, 1, 1], [], []>} : vector<4x4xbf16>, vector<4x256xbf16>, vector<4x256xf32> -> vector<4x256xf32>
    %23 = arith.mulf %20, %14 : f32
    %24 = vector.broadcast %23 : f32 to vector<4x1xf32>
    %25 = arith.mulf %24, %1 : vector<4x1xf32>
    %26 = arith.subf %2, %25 : vector<4x1xf32>
    %27 = vector.broadcast %20 : f32 to vector<4x256xf32>
    %28 = arith.mulf %27, %22 : vector<4x256xf32>
    %29 = vector.broadcast %26 : vector<4x1xf32> to vector<4x256xf32>
    %30 = arith.addf %28, %29 : vector<4x256xf32>
    %c0_14 = arith.constant 0 : index
    %c0_15 = arith.constant 0 : index
    %c0_16 = arith.constant 0 : index
    %31 = vector.load %arg5[%c0_14, %c0_15, %c0_16] : memref<2x4x256xf32, #tpu.memory_space<vmem>>, vector<1x4x256xf32>
    %32 = vector.shape_cast %31 : vector<1x4x256xf32> to vector<4x256xf32>
    %33 = vector.shape_cast %30 : vector<4x256xf32> to vector<1x4x256xf32>
    tpu.vector_store %arg5[%c0_14, %c0_15, %c0_16], %33 {strides = array<i32>} : memref<2x4x256xf32, #tpu.memory_space<vmem>>, vector<1x4x256xf32>,
    %c1 = arith.constant 1 : index
    %c0_17 = arith.constant 0 : index
    %c0_18 = arith.constant 0 : index
    %34 = vector.load %arg1[%c1, %c0_17, %c0_18] : memref<2x4x256xf32, #tpu.memory_space<vmem>>, vector<1x4x256xf32>
    %35 = vector.shape_cast %34 : vector<1x4x256xf32> to vector<4x256xf32>
    %36 = vector.shape_cast %35 : vector<4x256xf32> to vector<1x4x256xf32>
    %cst_19 = arith.constant dense<0.000000e+00> : vector<1xf32>
    %37 = vector.multi_reduction <add>, %36, %cst_19 [1, 2] : vector<1x4x256xf32> to vector<1xf32>
    %38 = vector.shape_cast %37 : vector<1xf32> to vector<1x1x1xf32>
    %39 = vector.extract %38[0, 0, 0] : f32 from vector<1x1x1xf32>
    %40 = arith.mulf %35, %35 : vector<4x256xf32>
    %41 = vector.shape_cast %40 : vector<4x256xf32> to vector<1x4x256xf32>
    %cst_20 = arith.constant dense<0.000000e+00> : vector<1xf32>
    %42 = vector.multi_reduction <add>, %41, %cst_20 [1, 2] : vector<1x4x256xf32> to vector<1xf32>
    %43 = vector.shape_cast %42 : vector<1xf32> to vector<1x1x1xf32>
    %44 = vector.extract %43[0, 0, 0] : f32 from vector<1x1x1xf32>
    %cst_21 = arith.constant 9.765625E-4 : f32
    %45 = arith.mulf %39, %cst_21 : f32
    %cst_22 = arith.constant 9.765625E-4 : f32
    %46 = arith.mulf %44, %cst_22 : f32
    %47 = arith.mulf %45, %45 : f32
    %48 = arith.subf %46, %47 : f32
    %cst_23 = arith.constant 0.000000e+00 : f32
    %49 = arith.maximumf %48, %cst_23 : f32
    %cst_24 = arith.constant 9.99999974E-6 : f32
    %50 = arith.addf %49, %cst_24 : f32
    %51 = math.rsqrt %50 : f32
    %52 = arith.truncf %35 : vector<4x256xf32> to vector<4x256xbf16>
    %cst_25 = arith.constant dense<0.000000e+00> : vector<4x256xf32>
    %53 = tpu.matmul %0, %52, %cst_25 {dimension_numbers = #tpu.dot_dimension_numbers<[1], [0], [0], [1], [0, 0, 1, 1], [], []>} : vector<4x4xbf16>, vector<4x256xbf16>, vector<4x256xf32> -> vector<4x256xf32>
    %54 = arith.mulf %51, %45 : f32
    %55 = vector.broadcast %54 : f32 to vector<4x1xf32>
    %56 = arith.mulf %55, %1 : vector<4x1xf32>
    %57 = arith.subf %2, %56 : vector<4x1xf32>
    %58 = vector.broadcast %51 : f32 to vector<4x256xf32>
    %59 = arith.mulf %58, %53 : vector<4x256xf32>
    %60 = vector.broadcast %57 : vector<4x1xf32> to vector<4x256xf32>
    %61 = arith.addf %59, %60 : vector<4x256xf32>
    %c1_26 = arith.constant 1 : index
    %c0_27 = arith.constant 0 : index
    %c0_28 = arith.constant 0 : index
    %62 = vector.load %arg5[%c1_26, %c0_27, %c0_28] : memref<2x4x256xf32, #tpu.memory_space<vmem>>, vector<1x4x256xf32>
    %63 = vector.shape_cast %62 : vector<1x4x256xf32> to vector<4x256xf32>
    %64 = vector.shape_cast %61 : vector<4x256xf32> to vector<1x4x256xf32>
    tpu.vector_store %arg5[%c1_26, %c0_27, %c0_28], %64 {strides = array<i32>} : memref<2x4x256xf32, #tpu.memory_space<vmem>>, vector<1x4x256xf32>,
    return
  }
  func.func @transform_0(%arg0: i32) -> (i32, i32, i32) {
    %c0_i32 = arith.constant 0 : i32
    %c0_i32_0 = arith.constant 0 : i32
    %c0_i32_1 = arith.constant 0 : i32
    return %arg0, %c0_i32, %c0_i32_0 : i32, i32, i32
  }
  func.func @transform_1(%arg0: i32) -> (i32, i32) {
    %c0_i32 = arith.constant 0 : i32
    %c0_i32_0 = arith.constant 0 : i32
    %c0_i32_1 = arith.constant 0 : i32
    return %c0_i32, %c0_i32_0 : i32, i32
  }
  func.func @transform_2(%arg0: i32) -> (i32, i32) {
    %c0_i32 = arith.constant 0 : i32
    %c0_i32_0 = arith.constant 0 : i32
    %c0_i32_1 = arith.constant 0 : i32
    return %c0_i32, %c0_i32_0 : i32, i32
  }
  func.func @transform_3(%arg0: i32) -> (i32, i32) {
    %c0_i32 = arith.constant 0 : i32
    %c0_i32_0 = arith.constant 0 : i32
    %c0_i32_1 = arith.constant 0 : i32
    return %c0_i32, %c0_i32_0 : i32, i32
  }
  func.func @transform_4(%arg0: i32) -> (i32, i32, i32) {
    %c0_i32 = arith.constant 0 : i32
    %c0_i32_0 = arith.constant 0 : i32
    %c0_i32_1 = arith.constant 0 : i32
    return %arg0, %c0_i32, %c0_i32_0 : i32, i32, i32
  }
}

</mosaic_0001>

<llo_original>
// kernel: tpu_custom_call.1
$region0: #{tpu_custom_call.1}
  #allocation0 [shape = 'u32[]', space=smem, size = 0x4, offset = 0x4, fixed_abs, tag = 'smem constant byte address 0x4 - core index']
  #allocation1 [shape = 'u32[144,128]{1,0:T(1,128)}', space=vmem, size = 0x12000, scoped, tag = 'internal scratch']
  %s0 = inlined_call_operand.hbm [shape: f32[2,4,256], index: 0, kind: input, shape index: {}]
  %s1 = inlined_call_operand.vmem [shape: bf16[4,4], index: 1, kind: input, shape index: {}]
  %s2 = inlined_call_operand.vmem [shape: f32[4,1], index: 2, kind: input, shape index: {}]
  %s3 = inlined_call_operand.vmem [shape: f32[4,1], index: 3, kind: input, shape index: {}]
  %s4 = inlined_call_operand.hbm [shape: f32[2,4,256], index: 4, kind: output, shape index: {}]
  %s5 = sld [smem:[#allocation0]]
  $region30: #{tpu_custom_call.1} parent=0
    _
  %s7 = ssub.s32 1, %s5
  %s8 = scalar_select 0, %s7, %s5
  $region1: #{tpu_custom_call.1} parent=0
    #allocation2 [shape = 'u8[8192]{0}', space=vmem, size = 0x2000, scoped, tag = 'input window, operand 0, single buffered']
    #allocation3 [shape = 's32[1]{0}', space=sflag, size = 0x4, scoped, tag = 'scoped memory for tpu_custom_call.1']
    #allocation4 [shape = 's32[1]{0}', space=sflag, size = 0x4, scoped, tag = 'scoped memory for tpu_custom_call.1']
    #allocation5 [shape = 'u8[8192]{0}', space=vmem, size = 0x2000, scoped, tag = 'output window, operand 0, single buffered']
    %9 = vsyncpa [#allocation3], 0
    %10 = vsyncpa [#allocation4], 0
    // Predicated region
    $region2: #{tpu_custom_call.1} parent=1 // pred_check
      _
    $region3: #{tpu_custom_call.1} parent=1 // pred_check_branch
      %12 = sbr.rel (0) target = $region5
    $region4: #{tpu_custom_call.1} parent=1 // pred_region
      %s14 = ssub.s32 256, 256
      %15 = vsyncadd [#allocation3], %s14
      %s16 = sshll.u32 [#allocation2], 4
      %s17 = int_to_ptr.vmem [resolvable:$true] %s16
      %22 = dma.hbm_to_vmem [thread:$0]  %s0, 256, %s17, [#allocation3], 128, 128, 8
    $region5: #{tpu_custom_call.1} parent=1 // pred_fallthru
      _
    // Predicated region
    $region6: #{tpu_custom_call.1} parent=1 // pred_check
      _
    $region7: #{tpu_custom_call.1} parent=1 // pred_check_branch
      %24 = sbr.rel (0) target = $region9
    $region8: #{tpu_custom_call.1} parent=1 // pred_region
      _
    $region9: #{tpu_custom_call.1} parent=1 // pred_fallthru
      _
    // Predicated region
    $region10: #{tpu_custom_call.1} parent=1 // pred_check
      _
    $region11: #{tpu_custom_call.1} parent=1 // pred_check_branch
      %26 = sbr.rel (0) target = $region13
    $region12: #{tpu_custom_call.1} parent=1 // pred_region
      _
    $region13: #{tpu_custom_call.1} parent=1 // pred_fallthru
      _
    // Predicated region
    $region14: #{tpu_custom_call.1} parent=1 // pred_check
      _
    $region15: #{tpu_custom_call.1} parent=1 // pred_check_branch
      %28 = sbr.rel (0) target = $region17
    $region16: #{tpu_custom_call.1} parent=1 // pred_region
      _
    $region17: #{tpu_custom_call.1} parent=1 // pred_fallthru
      _
    // Predicated region
    $region18: #{tpu_custom_call.1} parent=1 // pred_check
      _
    $region19: #{tpu_custom_call.1} parent=1 // pred_check_branch
      %30 = sbr.rel (0) target = $region21
    $region20: #{tpu_custom_call.1} parent=1 // pred_region
      %31 = dma.done [#allocation3], 256
    $region21: #{tpu_custom_call.1} parent=1 // pred_fallthru
      _
    %v33 = vld [vmem:[%s1] sm:$0x3]
    %v34 = vld [vmem:[%s2] sm:$0xf]
    %v35 = vld [vmem:[%s3] sm:$0xf]
    %v36 = vld [vmem:[#allocation2] sm:$0xff]
    %v38 = vcombine.high %v36, %v36
    %vm40 = vcmask 1043456
    %v41 = vsel %vm40, %v36, 0.0
    %v42 = vsel %vm40, %v38, 0.0
    %v43 = vadd.f32 %v41, %v42
    %44 = vadd.xlane.f32.xlu0 %v43
    %v45 = vpop.xlane.xlu0 %44
    %v46 = vrot.slane %v45, 4
    %v47 = vadd.f32 %v45, %v46
    %v48 = vrot.slane %v47, 2
    %v49 = vadd.f32 %v47, %v48
    %v50 = vrot.slane %v49, 1
    %v51 = vadd.f32 %v49, %v50
    %s52 = vtos %v51
    %v53 = vmul.f32 %v36, %v36
    %v55 = vcombine.high %v53, %v53
    %v57 = vsel %vm40, %v53, 0.0
    %v58 = vsel %vm40, %v55, 0.0
    %v59 = vadd.f32 %v57, %v58
    %60 = vadd.xlane.f32.xlu0 %v59
    %v61 = vpop.xlane.xlu0 %60
    %v62 = vrot.slane %v61, 4
    %v63 = vadd.f32 %v61, %v62
    %v64 = vrot.slane %v63, 2
    %v65 = vadd.f32 %v63, %v64
    %v66 = vrot.slane %v65, 1
    %v67 = vadd.f32 %v65, %v66
    %s68 = vtos %v67
    %s69 = smul.f32 %s52, 0.0009765625
    %s70 = smul.f32 %s68, 0.0009765625
    %s71 = smul.f32 %s69, %s69
    %s72 = ssub.f32 %s70, %s71
    %s73 = smax.f32 %s72, 0.0
    %s74 = sadd.f32 %s73, 1e-05
    %v75 = vstv %s74
    %v76 = vrsqrt.pop %v75
    %s77 = vtos %v76
    %v78 = vpack.c.bf16 %v36, %v36
    %v79 = vpack.c.bf16 %v38, %v38
    %vm80 = vcmask 31744
    %v82 = vsel %vm80, %v33, 0
    %vm84 = vcmask 1041408
    %v86 = vsel %vm84, %v78, 0
    %v89 = vsel %vm84, %v79, 0
    %91 = vmatprep.subr.bf16.mxu0 0
    %92 = vmatpush1.bf16.msra.mxu0 0
    %93 = vmatprep.subr.bf16.mxu0 0
    %94 = vmatpush1.bf16.msra.mxu0 0
    %95 = vmatprep.subr.bf16.mxu0 0
    %96 = vmatpush1.bf16.msra.mxu0 0
    %97 = vmatprep.subr.bf16.mxu0 0
    %98 = vmatpush1.bf16.msra.mxu0 0
    %99 = vmatprep.subr.bf16.mxu0 0
    %100 = vmatpush1.bf16.msra.mxu0 0
    %101 = vmatprep.subr.bf16.mxu0 0
    %102 = vmatpush1.bf16.msra.mxu0 0
    %103 = vmatprep.subr.bf16.mxu0 0
    %104 = vmatpush1.bf16.msra.mxu0 0
    %105 = vmatprep.subr.bf16.mxu0 %v89
    %106 = vmatpush1.bf16.msra.mxu0 %v86
    %107 = vmatprep.subr.bf16.mxu0 0
    %108 = vmatpush2.bf16.msra.mxu0 0
    %109 = vmatprep.subr.bf16.mxu0 0
    %110 = vmatpush2.bf16.msra.mxu0 0
    %111 = vmatprep.subr.bf16.mxu0 0
    %112 = vmatpush2.bf16.msra.mxu0 0
    %113 = vmatprep.subr.bf16.mxu0 0
    %114 = vmatpush2.bf16.msra.mxu0 0
    %115 = vmatprep.subr.bf16.mxu0 0
    %116 = vmatpush2.bf16.msra.mxu0 0
    %117 = vmatprep.subr.bf16.mxu0 0
    %118 = vmatpush2.bf16.msra.mxu0 0
    %119 = vmatprep.subr.bf16.mxu0 0
    %120 = vmatpush2.bf16.msra.mxu0 0
    %121 = vmatprep.subr.bf16.mxu0 0
    %122 = vmatpush2.bf16.msra.mxu0 0
    %123 = vmatprep.mubr.bf16.mxu0 0
    %124 = vmatmul.mubr.bf16.gmra.mxu0 %v82
    %v125 = vpop.f32.mrf.mxu0
    %v126 = vadd.f32 0.0, %v125
    %v127 = vpop.f32.mrf.mxu0
    %v128 = vadd.f32 0.0, %v127
    %v129 = vpop.f32.mrf.mxu0
    %v130 = vpop.f32.mrf.mxu0
    %131 = vdwg.mxu0
    %s132 = smul.f32 %s77, %s69
    %v133 = vstv %s132
    %v134 = vmul.f32 %v133, %v34
    %v135 = vsub.f32 %v35, %v134
    %v136 = vstv %s77
    %v137 = vmul.f32 %v136, %v126
    %v138 = vmul.f32 %v136, %v128
    %140 = vset.pattern.permute.xlu0 0
    %141 = vperm.xlu0 %140, %v135
    %v142 = vpop.permute.xlu0 %141
    %v144 = vadd.f32 %v137, %v142
    %v145 = vadd.f32 %v138, %v142
    %v148 = vcombine.low %v144, %v145
    %150 = vst [vmem:[#allocation5] sm:$0xff] %v148
    %s151 = scalar_lea.vmem [#allocation2], 8
    %v152 = vld [vmem:[%s151] sm:$0xff]
    %v154 = vcombine.high %v152, %v152
    %v156 = vsel %vm40, %v152, 0.0
    %v157 = vsel %vm40, %v154, 0.0
    %v158 = vadd.f32 %v156, %v157
    %159 = vadd.xlane.f32.xlu0 %v158
    %v160 = vpop.xlane.xlu0 %159
    %v161 = vrot.slane %v160, 4
    %v162 = vadd.f32 %v160, %v161
    %v163 = vrot.slane %v162, 2
    %v164 = vadd.f32 %v162, %v163
    %v165 = vrot.slane %v164, 1
    %v166 = vadd.f32 %v164, %v165
    %s167 = vtos %v166
    %v168 = vmul.f32 %v152, %v152
    %v170 = vcombine.high %v168, %v168
    %v172 = vsel %vm40, %v168, 0.0
    %v173 = vsel %vm40, %v170, 0.0
    %v174 = vadd.f32 %v172, %v173
    %175 = vadd.xlane.f32.xlu0 %v174
    %v176 = vpop.xlane.xlu0 %175
    %v177 = vrot.slane %v176, 4
    %v178 = vadd.f32 %v176, %v177
    %v179 = vrot.slane %v178, 2
    %v180 = vadd.f32 %v178, %v179
    %v181 = vrot.slane %v180, 1
    %v182 = vadd.f32 %v180, %v181
    %s183 = vtos %v182
    %s184 = smul.f32 %s167, 0.0009765625
    %s185 = smul.f32 %s183, 0.0009765625
    %s186 = smul.f32 %s184, %s184
    %s187 = ssub.f32 %s185, %s186
    %s188 = smax.f32 %s187, 0.0
    %s189 = sadd.f32 %s188, 1e-05
    %v190 = vstv %s189
    %v191 = vrsqrt.pop %v190
    %s192 = vtos %v191
    %v193 = vpack.c.bf16 %v152, %v152
    %v194 = vpack.c.bf16 %v154, %v154
    %v196 = vsel %vm84, %v193, 0
    %v199 = vsel %vm84, %v194, 0
    %201 = vmatprep.subr.bf16.mxu0 0
    %202 = vmatpush1.bf16.msra.mxu0 0
    %203 = vmatprep.subr.bf16.mxu0 0
    %204 = vmatpush1.bf16.msra.mxu0 0
    %205 = vmatprep.subr.bf16.mxu0 0
    %206 = vmatpush1.bf16.msra.mxu0 0
    %207 = vmatprep.subr.bf16.mxu0 0
    %208 = vmatpush1.bf16.msra.mxu0 0
    %209 = vmatprep.subr.bf16.mxu0 0
    %210 = vmatpush1.bf16.msra.mxu0 0
    %211 = vmatprep.subr.bf16.mxu0 0
    %212 = vmatpush1.bf16.msra.mxu0 0
    %213 = vmatprep.subr.bf16.mxu0 0
    %214 = vmatpush1.bf16.msra.mxu0 0
    %215 = vmatprep.subr.bf16.mxu0 %v199
    %216 = vmatpush1.bf16.msra.mxu0 %v196
    %217 = vmatprep.subr.bf16.mxu0 0
    %218 = vmatpush2.bf16.msra.mxu0 0
    %219 = vmatprep.subr.bf16.mxu0 0
    %220 = vmatpush2.bf16.msra.mxu0 0
    %221 = vmatprep.subr.bf16.mxu0 0
    %222 = vmatpush2.bf16.msra.mxu0 0
    %223 = vmatprep.subr.bf16.mxu0 0
    %224 = vmatpush2.bf16.msra.mxu0 0
    %225 = vmatprep.subr.bf16.mxu0 0
    %226 = vmatpush2.bf16.msra.mxu0 0
    %227 = vmatprep.subr.bf16.mxu0 0
    %228 = vmatpush2.bf16.msra.mxu0 0
    %229 = vmatprep.subr.bf16.mxu0 0
    %230 = vmatpush2.bf16.msra.mxu0 0
    %231 = vmatprep.subr.bf16.mxu0 0
    %232 = vmatpush2.bf16.msra.mxu0 0
    %233 = vmatprep.mubr.bf16.mxu0 0
    %234 = vmatmul.mubr.bf16.gmra.mxu0 %v82
    %v235 = vpop.f32.mrf.mxu0
    %v236 = vadd.f32 0.0, %v235
    %v237 = vpop.f32.mrf.mxu0
    %v238 = vadd.f32 0.0, %v237
    %v239 = vpop.f32.mrf.mxu0
    %v240 = vpop.f32.mrf.mxu0
    %241 = vdwg.mxu0
    %s242 = smul.f32 %s192, %s184
    %v243 = vstv %s242
    %v244 = vmul.f32 %v243, %v34
    %v245 = vsub.f32 %v35, %v244
    %v246 = vstv %s192
    %v247 = vmul.f32 %v246, %v236
    %v248 = vmul.f32 %v246, %v238
    %250 = vset.pattern.permute.xlu0 0
    %251 = vperm.xlu0 %250, %v245
    %v252 = vpop.permute.xlu0 %251
    %v254 = vadd.f32 %v247, %v252
    %v255 = vadd.f32 %v248, %v252
    %v258 = vcombine.low %v254, %v255
    %s260 = scalar_lea.vmem [#allocation5], 8
    %261 = vst [vmem:[%s260] sm:$0xff] %v258
    // Predicated region
    $region22: #{tpu_custom_call.1} parent=1 // pred_check
      _
    $region23: #{tpu_custom_call.1} parent=1 // pred_check_branch
      %263 = sbr.rel (0) target = $region25
    $region24: #{tpu_custom_call.1} parent=1 // pred_region
      %s265 = ssub.s32 256, 256
      %266 = vsyncadd [#allocation4], %s265
      %s267 = sshll.u32 [#allocation5], 4
      %s268 = int_to_ptr.vmem [resolvable:$true] %s267
      %273 = dma.vmem_to_hbm [thread:$0]  %s268, 256, %s4, [#allocation4], 128, 128, 8
    $region25: #{tpu_custom_call.1} parent=1 // pred_fallthru
      _
    // Predicated region
    $region26: #{tpu_custom_call.1} parent=1 // pred_check
      _
    $region27: #{tpu_custom_call.1} parent=1 // pred_check_branch
      %275 = sbr.rel (0) target = $region29
    $region28: #{tpu_custom_call.1} parent=1 // pred_region
      %276 = dma.done [#allocation4], 256
    $region29: #{tpu_custom_call.1} parent=1 // pred_fallthru
      _
    %277 = vsyncpa [#allocation3], 1
    %278 = vsyncpa [#allocation4], 1

</llo_original>
